<compile_context>
chip_gen: v7x
topology: tpu7x:2x2x1
jax: 0.10.0
libtpu: 0.0.40
codegen_flags: <defaults>
</compile_context>

<pallas_src>
import math

import jax
import jax.numpy as jnp
from jax import lax
from jax.experimental import pallas as pl
from jax.experimental.pallas import tpu as pltpu

_ROW_GRAIN = 32            # block row granularity (covers f32 / bf16 / int8 sublane tiling)
_HARD_BLOCK_CAP = 8 << 20  # if even a minimal block exceeds this, fall back to plain XLA


def _round_up(x, m):
    return ((x + m - 1) // m) * m


def _static_float(x):
    try:
        return float(x)
    except Exception:
        return None


def _chip_profile():
    """Generation-gated knobs: (per-operand block byte budget, #TC splits)."""
    try:
        kind = jax.devices()[0].device_kind.lower()
    except Exception:
        kind = ""
    if "v7" in kind or "7x" in kind:
        # v7x: 2 TensorCores, ~3.2 TB/s HBM -> 2 MiB blocks to amortize step overhead.
        return 2 << 20, 2
    if "v6" in kind:
        return 2 << 20, 1
    # v5e & unknown: 1 MiB blocks (scoped-VMEM default is 16 MiB on v5e).
    return 1 << 20, 1


def _as_2d(shape, numel):
    """Pick a (rows, cols) view reachable by a free (bitcast) reshape: rows*cols == numel."""
    for cols in (512, 256, 128):
        if numel % cols == 0:
            return numel // cols, cols
    cols = int(shape[-1]) if len(shape) >= 1 else 1
    cols = max(cols, 1)
    return numel // cols, cols


# ---------------------------------------------------------------------------
# Kernels
# ---------------------------------------------------------------------------
def _build_elem_kernel(weighted, loss_weight):
    lw = float(loss_weight)

    def body(p_ref, t_ref, w_ref, o_ref):
        d = p_ref[...].astype(jnp.float32) - t_ref[...].astype(jnp.float32)
        out = (d * d) * lw
        if w_ref is not None:
            out = out * w_ref[...].astype(jnp.float32)
        o_ref[...] = out.astype(o_ref.dtype)

    if weighted:
        def kernel(p_ref, t_ref, w_ref, o_ref):
            body(p_ref, t_ref, w_ref, o_ref)
    else:
        def kernel(p_ref, t_ref, o_ref):
            body(p_ref, t_ref, None, o_ref)
    return kernel


def _build_sum_kernel(weighted, two_axis, block_r, rows, cols,
                      steps_per_split, scale, need_mask):
    scale = float(scale)

    def body(p_ref, t_ref, w_ref, o_ref, acc_ref):
        if two_axis:
            c, i = pl.program_id(0), pl.program_id(1)
            step = c * steps_per_split + i
            is_first = i == 0
            is_last = i == pl.num_programs(1) - 1
        else:
            i = pl.program_id(0)
            step = i
            is_first = i == 0
            is_last = i == pl.num_programs(0) - 1

        @pl.when(is_first)
        def _():
            acc_ref[...] = jnp.zeros_like(acc_ref)

        d = p_ref[...].astype(jnp.float32) - t_ref[...].astype(jnp.float32)
        sq = d * d
        if w_ref is not None:
            sq = sq * w_ref[...].astype(jnp.float32)
        if need_mask:
            # Mask rows past the logical end of the data (OOB block region is garbage).
            row_ids = lax.broadcasted_iota(jnp.int32, (block_r, cols), 0)
            valid = rows - step * block_r
            sq = jnp.where(row_ids < valid, sq, 0.0)
        # Elementwise VPU fold into the resident (8, cols) accumulator.
        acc_ref[...] += jnp.sum(sq.reshape(-1, 8, cols), axis=0)

        @pl.when(is_last)
        def _():
            # Fused finalize: cross-lane reduce + static scale, splat into the output block.
            total = jnp.sum(acc_ref[...]) * scale
            o_ref[...] = jnp.full(o_ref.shape, total, jnp.float32)

    if weighted:
        def kernel(p_ref, t_ref, w_ref, o_ref, acc_ref):
            body(p_ref, t_ref, w_ref, o_ref, acc_ref)
    else:
        def kernel(p_ref, t_ref, o_ref, acc_ref):
            body(p_ref, t_ref, None, o_ref, acc_ref)
    return kernel


# ---------------------------------------------------------------------------
# Plain-XLA fallback (degenerate / pathological shapes only)
# ---------------------------------------------------------------------------
def _mse_loss_xla(pred, target, weight, reduction, loss_weight, avg_factor):
    loss = (pred.astype(jnp.float32) - target.astype(jnp.float32)) ** 2
    if weight is not None:
        loss = loss * weight.astype(jnp.float32)
    if reduction == "none":
        return (loss_weight * loss).astype(pred.dtype)
    total = jnp.sum(loss)
    if avg_factor is not None:
        out = total / avg_factor
    elif reduction == "mean":
        out = total / max(pred.size, 1)
    else:
        out = total
    return (jnp.float32(loss_weight) * out).astype(pred.dtype)


# ---------------------------------------------------------------------------
# Wrapper
# ---------------------------------------------------------------------------
def mse_loss_pallas(pred, target, weight=None, *, reduction="mean",
                    loss_weight=3.0, avg_factor=None):
    if pred.shape != target.shape:
        raise ValueError("pred and target must have the same shape")
    if reduction not in ("none", "mean", "sum"):
        raise ValueError(f"unknown reduction {reduction!r}")
    if avg_factor is not None and reduction != "mean":
        raise ValueError("avg_factor is only supported with reduction='mean'")

    orig_shape = pred.shape
    numel = int(math.prod(orig_shape))

    if weight is not None and weight.shape != orig_shape:
        # TODO(synk): feed small broadcastable weights through their own BlockSpec +
        # in-kernel broadcast instead of materializing a pred-sized copy.
        weight = jnp.broadcast_to(weight, orig_shape)

    if numel == 0:
        return _mse_loss_xla(pred, target, weight, reduction, loss_weight, avg_factor)

    rows, cols = _as_2d(orig_shape, numel)
    block_bytes, num_splits = _chip_profile()
    cols_padded = _round_up(cols, 128)
    if _ROW_GRAIN * cols_padded * 4 > _HARD_BLOCK_CAP:
        # TODO(synk): column-tile pathologically wide, 128-indivisible last dims.
        return _mse_loss_xla(pred, target, weight, reduction, loss_weight, avg_factor)

    cap = (block_bytes // (4 * cols_padded)) // _ROW_GRAIN * _ROW_GRAIN
    block_r = min(_round_up(rows, _ROW_GRAIN), max(cap, _ROW_GRAIN))

    weighted = weight is not None

    # Free (bitcast) reshapes: rows * cols == numel exactly -> no pad / slice copies.
    p2 = pred.reshape(rows, cols)
    t2 = target.reshape(rows, cols)
    w2 = weight.reshape(rows, cols) if weighted else None

    num_blocks = pl.cdiv(rows, block_r)

    # ---------------------- reduction='none' (elementwise) ------------------
    if reduction == "none":
        tile = pl.BlockSpec((block_r, cols), lambda i: (i, 0))
        in_specs = [tile, tile] + ([tile] if weighted else [])
        operands = [p2, t2] + ([w2] if weighted else [])
        out2 = pl.pallas_call(
            _build_elem_kernel(weighted, loss_weight),
            out_shape=jax.ShapeDtypeStruct((rows, cols), pred.dtype),
            grid_spec=pltpu.PrefetchScalarGridSpec(
                num_scalar_prefetch=0,
                grid=(num_blocks,),
                in_specs=in_specs,
                out_specs=tile,
            ),
            compiler_params=pltpu.CompilerParams(
                dimension_semantics=("parallel",)),
        )(*operands)
        return out2.reshape(orig_shape)

    # ---------------------- 'mean' / 'sum' (reduction) ----------------------
    # Small-input fast path: skip the multi-core split unless each split gets >=2 steps.
    if num_splits > 1 and rows < 4 * block_r:
        num_splits = 1

    # Fold loss_weight and the mean/avg_factor denominator into the kernel when static.
    lw = float(loss_weight)
    post_div = None
    if reduction == "mean":
        denom = numel if avg_factor is None else avg_factor
        denom_f = _static_float(denom)
        if denom_f is not None:
            scale = lw / denom_f
        else:
            scale = lw
            post_div = denom
    else:  # 'sum'
        scale = lw

    if num_splits == 1:
        grid = (num_blocks,)
        steps_per_split = num_blocks
        in_map = lambda i: (i, 0)
        out_map = lambda i: (0, 0)
        dims = ("arbitrary",)
        two_axis = False
    else:
        steps_per_split = pl.cdiv(rows, num_splits * block_r)
        grid = (num_splits, steps_per_split)
        sps = steps_per_split
        max_blk = num_blocks - 1
        # Clamp so no block starts past the array end; the in-kernel mask (based on the
        # *logical* step) zeroes any duplicated rows, so clamping is correctness-safe.
        in_map = lambda c, i: (jnp.minimum(c * sps + i, max_blk), 0)
        out_map = lambda c, i: (c, 0)
        # TODO(synk): on v7x verify 'parallel' actually shards this axis across both
        # TensorCores (else switch to pltpu.CORE_PARALLEL).
        dims = ("parallel", "arbitrary")
        two_axis = True

    need_mask = (num_splits * steps_per_split * block_r) != rows

    in_spec = pl.BlockSpec((block_r, cols), in_map)
    in_specs = [in_spec, in_spec] + ([in_spec] if weighted else [])
    operands = [p2, t2] + ([w2] if weighted else [])

    partials = pl.pallas_call(
        _build_sum_kernel(weighted, two_axis, block_r, rows, cols,
                          steps_per_split, scale, need_mask),
        out_shape=jax.ShapeDtypeStruct((num_splits * 8, 128), jnp.float32),
        grid_spec=pltpu.PrefetchScalarGridSpec(
            num_scalar_prefetch=0,
            grid=grid,
            in_specs=in_specs,
            out_specs=pl.BlockSpec((8, 128), out_map),
            scratch_shapes=[pltpu.VMEM((8, cols), jnp.float32)],
        ),
        compiler_params=pltpu.CompilerParams(dimension_semantics=dims),
    )(*operands)

    total = partials[0, 0]
    for c in range(1, num_splits):
        total = total + partials[8 * c, 0]
    if post_div is not None:
        total = total / post_div
    return total.astype(pred.dtype)


class MSELossPallas:
    """JAX/Pallas port of the PyTorch MSELoss module."""

    def __init__(self, reduction="mean", loss_weight=3.0):
        self.reduction = reduction
        self.loss_weight = loss_weight

    def __call__(self, pred, target, weight=None, avg_factor=None):
        return mse_loss_pallas(pred, target, weight,
                               reduction=self.reduction,
                               loss_weight=self.loss_weight,
                               avg_factor=avg_factor)


# ---------------------------------------------------------------------------
if __name__ == "__main__":
    key = jax.random.PRNGKey(0)
    k1, k2, k3 = jax.random.split(key, 3)

    # NCHW, small shapes
    B, C, H, W = 2, 4, 16, 16
    pred = jax.random.normal(k1, (B, C, H, W), dtype=jnp.float32)
    target = jax.random.normal(k2, (B, C, H, W), dtype=jnp.float32)
    weight = jax.random.uniform(k3, (B, C, H, W), dtype=jnp.float32)

    module = MSELossPallas(reduction="mean", loss_weight=3.0)

    # default path: mean reduction, no weight (2-operand kernel, fused finalize)
    loss_mean = module(pred, target)
    jax.block_until_ready(loss_mean)

    # weighted + avg_factor path (3-operand kernel)
    loss_avg = module(pred, target, weight=weight, avg_factor=100.0)
    jax.block_until_ready(loss_avg)

    # weighted 'sum' path
    loss_sum = MSELossPallas(reduction="sum", loss_weight=3.0)(
        pred, target, weight=weight)
    jax.block_until_ready(loss_sum)

    # reduction='none' paths (unweighted and weighted elementwise kernels)
    loss_none = MSELossPallas(reduction="none", loss_weight=3.0)(pred, target)
    loss_none_w = MSELossPallas(reduction="none", loss_weight=3.0)(
        pred, target, weight=weight)
    jax.block_until_ready(loss_none)
    jax.block_until_ready(loss_none_w)

    # reference checks in plain JAX
    ref_mean = 3.0 * jnp.mean((pred - target) ** 2)
    ref_avg = 3.0 * jnp.sum(weight * (pred - target) ** 2) / 100.0
    ref_sum = 3.0 * jnp.sum(weight * (pred - target) ** 2)
    ref_none = 3.0 * (pred - target) ** 2
    ref_none_w = 3.0 * weight * (pred - target) ** 2
    assert jnp.allclose(loss_mean, ref_mean, rtol=1e-5, atol=1e-5)
    assert jnp.allclose(loss_avg, ref_avg, rtol=1e-5, atol=1e-5)
    assert jnp.allclose(loss_sum, ref_sum, rtol=1e-4, atol=1e-4)
    assert jnp.allclose(loss_none, ref_none, rtol=1e-5, atol=1e-5)
    assert jnp.allclose(loss_none_w, ref_none_w, rtol=1e-5, atol=1e-5)
    assert loss_none.shape == pred.shape

    print("KERNEL_OK")
</pallas_src>

<mosaic_0001>
module attributes {stable_mosaic.version = 11 : i64} {
  func.func @kernel(%arg0: i32, %arg1: memref<32x512xf32, #tpu.memory_space<vmem>>, %arg2: memref<32x512xf32, #tpu.memory_space<vmem>>, %arg3: memref<8x128xf32, #tpu.memory_space<vmem>>, %arg4: memref<8x512xf32, #tpu.memory_space<vmem>>) attributes {dimension_semantics = [#tpu.dimension_semantics<arbitrary>], iteration_bounds = array<i64: 1>, scalar_prefetch = 0 : i64, scratch_operands = 1 : i64, tpu.core_type = #tpu.core_type<tc>, window_params = [{transform_indices = @transform_0, window_bounds = array<i64: 32, 512>}, {transform_indices = @transform_1, window_bounds = array<i64: 32, 512>}, {pipeline_mode = #tpu.pipeline_mode<synchronous>, transform_indices = @transform_2, window_bounds = array<i64: 8, 128>}]} {
    %c0_i32 = arith.constant 0 : i32
    %0 = arith.cmpi eq, %arg0, %c0_i32 : i32
    %c0_i32_0 = arith.constant 0 : i32
    %1 = arith.cmpi eq, %arg0, %c0_i32_0 : i32
    %2 = arith.extui %0 : i1 to i32
    %c0_i32_1 = arith.constant 0 : i32
    %3 = arith.cmpi ne, %2, %c0_i32_1 : i32
    scf.if %3 {
      %cst_11 = arith.constant 0.000000e+00 : f32
      %22 = vector.broadcast %cst_11 : f32 to vector<8x512xf32>
      %c0_12 = arith.constant 0 : index
      %c0_13 = arith.constant 0 : index
      %23 = vector.load %arg4[%c0_12, %c0_13] : memref<8x512xf32, #tpu.memory_space<vmem>>, vector<8x512xf32>
      tpu.vector_store %arg4[%c0_12, %c0_13], %22 {strides = array<i32>} : memref<8x512xf32, #tpu.memory_space<vmem>>, vector<8x512xf32>,
    } else {
    }
    %c0 = arith.constant 0 : index
    %c0_2 = arith.constant 0 : index
    %4 = vector.load %arg1[%c0, %c0_2] : memref<32x512xf32, #tpu.memory_space<vmem>>, vector<32x512xf32>
    %c0_3 = arith.constant 0 : index
    %c0_4 = arith.constant 0 : index
    %5 = vector.load %arg2[%c0_3, %c0_4] : memref<32x512xf32, #tpu.memory_space<vmem>>, vector<32x512xf32>
    %6 = arith.subf %4, %5 : vector<32x512xf32>
    %7 = arith.mulf %6, %6 : vector<32x512xf32>
    %8 = tpu.iota {dimensions = array<i32: 0>} : vector<32x512xi32>
    %c32_i32 = arith.constant 32 : i32
    %9 = arith.muli %arg0, %c32_i32 : i32
    %c4_i32 = arith.constant 4 : i32
    %10 = arith.subi %c4_i32, %9 : i32
    %11 = vector.broadcast %10 : i32 to vector<32x512xi32>
    %12 = arith.cmpi slt, %8, %11 : vector<32x512xi32>
    %cst = arith.constant 0.000000e+00 : f32
    %13 = vector.broadcast %cst : f32 to vector<32x512xf32>
    %14 = arith.select %12, %7, %13 : vector<32x512xi1>, vector<32x512xf32>
    %c0_5 = arith.constant 0 : index
    %c0_6 = arith.constant 0 : index
    %15 = vector.load %arg4[%c0_5, %c0_6] : memref<8x512xf32, #tpu.memory_space<vmem>>, vector<8x512xf32>
    %16 = vector.shape_cast %14 : vector<32x512xf32> to vector<4x8x512xf32>
    %cst_7 = arith.constant dense<0.000000e+00> : vector<8x512xf32>
    %17 = vector.multi_reduction <add>, %16, %cst_7 [0] : vector<4x8x512xf32> to vector<8x512xf32>
    %18 = arith.addf %15, %17 : vector<8x512xf32>
    %c0_8 = arith.constant 0 : index
    %c0_9 = arith.constant 0 : index
    %19 = vector.load %arg4[%c0_8, %c0_9] : memref<8x512xf32, #tpu.memory_space<vmem>>, vector<8x512xf32>
    tpu.vector_store %arg4[%c0_8, %c0_9], %18 {strides = array<i32>} : memref<8x512xf32, #tpu.memory_space<vmem>>, vector<8x512xf32>,
    %20 = arith.extui %1 : i1 to i32
    %c0_i32_10 = arith.constant 0 : i32
    %21 = arith.cmpi ne, %20, %c0_i32_10 : i32
    scf.if %21 {
      %c0_11 = arith.constant 0 : index
      %c0_12 = arith.constant 0 : index
      %22 = vector.load %arg4[%c0_11, %c0_12] : memref<8x512xf32, #tpu.memory_space<vmem>>, vector<8x512xf32>
      %23 = vector.shape_cast %22 : vector<8x512xf32> to vector<1x8x512xf32>
      %cst_13 = arith.constant dense<0.000000e+00> : vector<1xf32>
      %24 = vector.multi_reduction <add>, %23, %cst_13 [1, 2] : vector<1x8x512xf32> to vector<1xf32>
      %25 = vector.shape_cast %24 : vector<1xf32> to vector<1x1x1xf32>
      %26 = vector.extract %25[0, 0, 0] : f32 from vector<1x1x1xf32>
      %cst_14 = arith.constant 0.00146484375 : f32
      %27 = arith.mulf %26, %cst_14 : f32
      %28 = vector.broadcast %27 : f32 to vector<8x128xf32>
      %c0_15 = arith.constant 0 : index
      %c0_16 = arith.constant 0 : index
      %29 = vector.load %arg3[%c0_15, %c0_16] : memref<8x128xf32, #tpu.memory_space<vmem>>, vector<8x128xf32>
      tpu.vector_store %arg3[%c0_15, %c0_16], %28 {strides = array<i32>} : memref<8x128xf32, #tpu.memory_space<vmem>>, vector<8x128xf32>,
    } else {
    }
    return
  }
  func.func @transform_0(%arg0: i32) -> (i32, i32) {
    %c0_i32 = arith.constant 0 : i32
    %c0_i32_0 = arith.constant 0 : i32
    return %arg0, %c0_i32 : i32, i32
  }
  func.func @transform_1(%arg0: i32) -> (i32, i32) {
    %c0_i32 = arith.constant 0 : i32
    %c0_i32_0 = arith.constant 0 : i32
    return %arg0, %c0_i32 : i32, i32
  }
  func.func @transform_2(%arg0: i32) -> (i32, i32) {
    %c0_i32 = arith.constant 0 : i32
    %c0_i32_0 = arith.constant 0 : i32
    %c0_i32_1 = arith.constant 0 : i32
    return %c0_i32, %c0_i32_0 : i32, i32
  }
}

</mosaic_0001>

<llo_original>
// kernel: tpu_custom_call.1
$region0: #{tpu_custom_call.1}
  #allocation0 [shape = 'u32[]', space=smem, size = 0x4, offset = 0x4, fixed_abs, tag = 'smem constant byte address 0x4 - core index']
  #allocation1 [shape = 'u32[144,128]{1,0:T(1,128)}', space=vmem, size = 0x12000, scoped, tag = 'internal scratch']
  #allocation2 [shape = 'f32[8,512]{1,0:T(8,128)}', space=vmem, size = 0x4000, scoped, tag = 'scratch operand']
  %s0 = inlined_call_operand.hbm [shape: f32[4,512], index: 0, kind: input, shape index: {}]
  %s1 = inlined_call_operand.hbm [shape: f32[4,512], index: 1, kind: input, shape index: {}]
  %s2 = inlined_call_operand.hbm [shape: f32[8,128], index: 2, kind: output, shape index: {}]
  %s3 = sld [smem:[#allocation0]]
  $region34: #{tpu_custom_call.1} parent=0
    _
  %s5 = ssub.s32 1, %s3
  %s6 = scalar_select 0, %s5, %s3
  $region1: #{tpu_custom_call.1} parent=0
    #allocation3 [shape = 'u8[65536]{0}', space=vmem, size = 0x10000, scoped, tag = 'input window, operand 0, single buffered']
    #allocation4 [shape = 's32[1]{0}', space=sflag, size = 0x4, scoped, tag = 'scoped memory for tpu_custom_call.1']
    #allocation5 [shape = 's32[1]{0}', space=sflag, size = 0x4, scoped, tag = 'scoped memory for tpu_custom_call.1']
    #allocation6 [shape = 'u8[65536]{0}', space=vmem, size = 0x10000, scoped, tag = 'input window, operand 1, single buffered']
    #allocation7 [shape = 's32[1]{0}', space=sflag, size = 0x4, scoped, tag = 'scoped memory for tpu_custom_call.1']
    #allocation8 [shape = 'u8[4096]{0}', space=vmem, size = 0x1000, scoped, tag = 'output window, operand 0, single buffered']
    %7 = vsyncpa [#allocation4], 0
    %8 = vsyncpa [#allocation7], 0
    %9 = vsyncpa [#allocation5], 0
    // Predicated region
    $region2: #{tpu_custom_call.1} parent=1 // pred_check
      _
    $region3: #{tpu_custom_call.1} parent=1 // pred_check_branch
      %11 = sbr.rel (0) target = $region5
    $region4: #{tpu_custom_call.1} parent=1 // pred_region
      %s13 = ssub.s32 2048, 256
      %14 = vsyncadd [#allocation4], %s13
      %s15 = sshll.u32 [#allocation3], 4
      %s16 = int_to_ptr.vmem [resolvable:$true] %s15
      %21 = dma.hbm_to_vmem [thread:$0]  %s0, 256, %s16, [#allocation4], 256, 256, 16
    $region5: #{tpu_custom_call.1} parent=1 // pred_fallthru
      _
    // Predicated region
    $region6: #{tpu_custom_call.1} parent=1 // pred_check
      _
    $region7: #{tpu_custom_call.1} parent=1 // pred_check_branch
      %23 = sbr.rel (0) target = $region9
    $region8: #{tpu_custom_call.1} parent=1 // pred_region
      %s25 = ssub.s32 2048, 256
      %26 = vsyncadd [#allocation7], %s25
      %s27 = sshll.u32 [#allocation6], 4
      %s28 = int_to_ptr.vmem [resolvable:$true] %s27
      %33 = dma.hbm_to_vmem [thread:$0]  %s1, 256, %s28, [#allocation7], 256, 256, 16
    $region9: #{tpu_custom_call.1} parent=1 // pred_fallthru
      _
    // Predicated region
    $region10: #{tpu_custom_call.1} parent=1 // pred_check
      _
    $region11: #{tpu_custom_call.1} parent=1 // pred_check_branch
      %35 = sbr.rel (0) target = $region13
    $region12: #{tpu_custom_call.1} parent=1 // pred_region
      %36 = dma.done [#allocation4], 2048
    $region13: #{tpu_custom_call.1} parent=1 // pred_fallthru
      _
    // Predicated region
    $region14: #{tpu_custom_call.1} parent=1 // pred_check
      _
    $region15: #{tpu_custom_call.1} parent=1 // pred_check_branch
      %38 = sbr.rel (0) target = $region17
    $region16: #{tpu_custom_call.1} parent=1 // pred_region
      %39 = dma.done [#allocation7], 2048
    $region17: #{tpu_custom_call.1} parent=1 // pred_fallthru
      _
    %p40 = scmp.eq.s32.totalorder 0, 0
    // Predicated region
    $region18: #{tpu_custom_call.1} parent=1 // pred_check
      %p41 = pneg %p40
    $region19: #{tpu_custom_call.1} parent=1 // pred_check_branch
      %43 = sbr.rel (%p41) target = $region21
    $region20: #{tpu_custom_call.1} parent=1 // pred_region
      %44 = vst [vmem:[#allocation2] sm:$0xff] 0.0
      %45 = vst [vmem:[#allocation2 + $0x8] sm:$0xff] 0.0
      %46 = vst [vmem:[#allocation2 + $0x10] sm:$0xff] 0.0
      %47 = vst [vmem:[#allocation2 + $0x18] sm:$0xff] 0.0
    $region21: #{tpu_custom_call.1} parent=1 // pred_fallthru
      _
    %v48 = vld [vmem:[#allocation3] sm:$0xff]
    %v49 = vld [vmem:[#allocation3 + $0x8] sm:$0xff]
    %v50 = vld [vmem:[#allocation3 + $0x10] sm:$0xff]
    %v51 = vld [vmem:[#allocation3 + $0x18] sm:$0xff]
    %v52 = vld [vmem:[#allocation3 + $0x20] sm:$0xff]
    %v53 = vld [vmem:[#allocation3 + $0x28] sm:$0xff]
    %v54 = vld [vmem:[#allocation3 + $0x30] sm:$0xff]
    %v55 = vld [vmem:[#allocation3 + $0x38] sm:$0xff]
    %v56 = vld [vmem:[#allocation3 + $0x40] sm:$0xff]
    %v57 = vld [vmem:[#allocation3 + $0x48] sm:$0xff]
    %v58 = vld [vmem:[#allocation3 + $0x50] sm:$0xff]
    %v59 = vld [vmem:[#allocation3 + $0x58] sm:$0xff]
    %v60 = vld [vmem:[#allocation3 + $0x60] sm:$0xff]
    %v61 = vld [vmem:[#allocation3 + $0x68] sm:$0xff]
    %v62 = vld [vmem:[#allocation3 + $0x70] sm:$0xff]
    %v63 = vld [vmem:[#allocation3 + $0x78] sm:$0xff]
    %v64 = vld [vmem:[#allocation6] sm:$0xff]
    %v65 = vld [vmem:[#allocation6 + $0x8] sm:$0xff]
    %v66 = vld [vmem:[#allocation6 + $0x10] sm:$0xff]
    %v67 = vld [vmem:[#allocation6 + $0x18] sm:$0xff]
    %v68 = vld [vmem:[#allocation6 + $0x20] sm:$0xff]
    %v69 = vld [vmem:[#allocation6 + $0x28] sm:$0xff]
    %v70 = vld [vmem:[#allocation6 + $0x30] sm:$0xff]
    %v71 = vld [vmem:[#allocation6 + $0x38] sm:$0xff]
    %v72 = vld [vmem:[#allocation6 + $0x40] sm:$0xff]
    %v73 = vld [vmem:[#allocation6 + $0x48] sm:$0xff]
    %v74 = vld [vmem:[#allocation6 + $0x50] sm:$0xff]
    %v75 = vld [vmem:[#allocation6 + $0x58] sm:$0xff]
    %v76 = vld [vmem:[#allocation6 + $0x60] sm:$0xff]
    %v77 = vld [vmem:[#allocation6 + $0x68] sm:$0xff]
    %v78 = vld [vmem:[#allocation6 + $0x70] sm:$0xff]
    %v79 = vld [vmem:[#allocation6 + $0x78] sm:$0xff]
    %v80 = vsub.f32 %v48, %v64
    %v81 = vsub.f32 %v49, %v65
    %v82 = vsub.f32 %v50, %v66
    %v83 = vsub.f32 %v51, %v67
    %v84 = vsub.f32 %v52, %v68
    %v85 = vsub.f32 %v53, %v69
    %v86 = vsub.f32 %v54, %v70
    %v87 = vsub.f32 %v55, %v71
    %v88 = vsub.f32 %v56, %v72
    %v89 = vsub.f32 %v57, %v73
    %v90 = vsub.f32 %v58, %v74
    %v91 = vsub.f32 %v59, %v75
    %v92 = vsub.f32 %v60, %v76
    %v93 = vsub.f32 %v61, %v77
    %v94 = vsub.f32 %v62, %v78
    %v95 = vsub.f32 %v63, %v79
    %v96 = vmul.f32 %v80, %v80
    %v97 = vmul.f32 %v81, %v81
    %v98 = vmul.f32 %v82, %v82
    %v99 = vmul.f32 %v83, %v83
    %v100 = vmul.f32 %v84, %v84
    %v101 = vmul.f32 %v85, %v85
    %v102 = vmul.f32 %v86, %v86
    %v103 = vmul.f32 %v87, %v87
    %v104 = vmul.f32 %v88, %v88
    %v105 = vmul.f32 %v89, %v89
    %v106 = vmul.f32 %v90, %v90
    %v107 = vmul.f32 %v91, %v91
    %v108 = vmul.f32 %v92, %v92
    %v109 = vmul.f32 %v93, %v93
    %v110 = vmul.f32 %v94, %v94
    %v111 = vmul.f32 %v95, %v95
    %v112 = vlaneseq
    %v113 = vshrl.u32 %v112, 7
    %v114 = vadd.s32 %v113, 8
    %v115 = vadd.s32 %v113, 16
    %v116 = vadd.s32 %v113, 24
    %s117 = smul.u32 0, 32
    %s118 = ssub.s32 4, %s117
    %v119 = vstv %s118
    %vm120 = vcmp.lt.s32.totalorder %v113, %v119
    %vm121 = vcmp.lt.s32.totalorder %v114, %v119
    %vm122 = vcmp.lt.s32.totalorder %v115, %v119
    %vm123 = vcmp.lt.s32.totalorder %v116, %v119
    %v140 = vcombine.low %v96, %v98
    %v141 = vcombine.high %v96, %v98
    %v142 = vcombine.low %v97, %v99
    %v143 = vcombine.high %v97, %v99
    %v144 = vcombine.low %v100, %v102
    %v145 = vcombine.high %v100, %v102
    %v146 = vcombine.low %v101, %v103
    %v147 = vcombine.high %v101, %v103
    %v148 = vcombine.low %v104, %v106
    %v149 = vcombine.high %v104, %v106
    %v150 = vcombine.low %v105, %v107
    %v151 = vcombine.high %v105, %v107
    %v152 = vcombine.low %v108, %v110
    %v153 = vcombine.high %v108, %v110
    %v154 = vcombine.low %v109, %v111
    %v155 = vcombine.high %v109, %v111
    %v172 = vsel %vm120, %v140, 0.0
    %v173 = vsel %vm120, %v141, 0.0
    %v174 = vsel %vm120, %v142, 0.0
    %v175 = vsel %vm120, %v143, 0.0
    %v176 = vsel %vm121, %v144, 0.0
    %v177 = vsel %vm121, %v145, 0.0
    %v178 = vsel %vm121, %v146, 0.0
    %v179 = vsel %vm121, %v147, 0.0
    %v180 = vsel %vm122, %v148, 0.0
    %v181 = vsel %vm122, %v149, 0.0
    %v182 = vsel %vm122, %v150, 0.0
    %v183 = vsel %vm122, %v151, 0.0
    %v184 = vsel %vm123, %v152, 0.0
    %v185 = vsel %vm123, %v153, 0.0
    %v186 = vsel %vm123, %v154, 0.0
    %v187 = vsel %vm123, %v155, 0.0
    %v188 = vld [vmem:[#allocation2] sm:$0xff]
    %v189 = vld [vmem:[#allocation2 + $0x8] sm:$0xff]
    %v190 = vld [vmem:[#allocation2 + $0x10] sm:$0xff]
    %v191 = vld [vmem:[#allocation2 + $0x18] sm:$0xff]
    %v192 = vadd.f32 %v172, %v176
    %v193 = vadd.f32 %v192, %v180
    %v194 = vadd.f32 %v193, %v184
    %v195 = vadd.f32 %v173, %v177
    %v196 = vadd.f32 %v195, %v181
    %v197 = vadd.f32 %v196, %v185
    %v198 = vadd.f32 %v174, %v178
    %v199 = vadd.f32 %v198, %v182
    %v200 = vadd.f32 %v199, %v186
    %v201 = vadd.f32 %v175, %v179
    %v202 = vadd.f32 %v201, %v183
    %v203 = vadd.f32 %v202, %v187
    %v204 = vadd.f32 %v188, %v194
    %v205 = vadd.f32 %v189, %v197
    %v206 = vadd.f32 %v190, %v200
    %v207 = vadd.f32 %v191, %v203
    %208 = vst [vmem:[#allocation2] sm:$0xff] %v204
    %209 = vst [vmem:[#allocation2 + $0x8] sm:$0xff] %v205
    %210 = vst [vmem:[#allocation2 + $0x10] sm:$0xff] %v206
    %211 = vst [vmem:[#allocation2 + $0x18] sm:$0xff] %v207
    // Predicated region
    $region22: #{tpu_custom_call.1} parent=1 // pred_check
      %p212 = pneg %p40
    $region23: #{tpu_custom_call.1} parent=1 // pred_check_branch
      %214 = sbr.rel (%p212) target = $region25
    $region24: #{tpu_custom_call.1} parent=1 // pred_region
      %v215 = vld [vmem:[#allocation2] sm:$0xff]
      %v216 = vld [vmem:[#allocation2 + $0x8] sm:$0xff]
      %v217 = vld [vmem:[#allocation2 + $0x10] sm:$0xff]
      %v218 = vld [vmem:[#allocation2 + $0x18] sm:$0xff]
      %v219 = vadd.f32 %v215, %v216
      %v220 = vadd.f32 %v219, %v217
      %v221 = vadd.f32 %v220, %v218
      %222 = vadd.xlane.f32.xlu0 %v221
      %v223 = vpop.xlane.xlu0 %222
      %v224 = vrot.slane %v223, 4
      %v225 = vadd.f32 %v223, %v224
      %v226 = vrot.slane %v225, 2
      %v227 = vadd.f32 %v225, %v226
      %v228 = vrot.slane %v227, 1
      %v229 = vadd.f32 %v227, %v228
      %s230 = vtos %v229
      %s231 = smul.f32 %s230, 0.0014648438
      %v232 = vstv %s231
      %233 = vst [vmem:[#allocation8] sm:$0xff] %v232
    $region25: #{tpu_custom_call.1} parent=1 // pred_fallthru
      _
    // Predicated region
    $region26: #{tpu_custom_call.1} parent=1 // pred_check
      _
    $region27: #{tpu_custom_call.1} parent=1 // pred_check_branch
      %235 = sbr.rel (0) target = $region29
    $region28: #{tpu_custom_call.1} parent=1 // pred_region
      %s237 = ssub.s32 128, 128
      %238 = vsyncadd [#allocation5], %s237
      %s240 = sshll.u32 [#allocation8], 4
      %s241 = int_to_ptr.vmem [resolvable:$true] %s240
      %243 = dma.vmem_to_hbm [thread:$0]  %s241, 128, %s2, [#allocation5]
    $region29: #{tpu_custom_call.1} parent=1 // pred_fallthru
      _
    // Predicated region
    $region30: #{tpu_custom_call.1} parent=1 // pred_check
      _
    $region31: #{tpu_custom_call.1} parent=1 // pred_check_branch
      %245 = sbr.rel (0) target = $region33
    $region32: #{tpu_custom_call.1} parent=1 // pred_region
      %246 = dma.done [#allocation5], 128
    $region33: #{tpu_custom_call.1} parent=1 // pred_fallthru
      _
    %247 = vsyncpa [#allocation4], 1
    %248 = vsyncpa [#allocation7], 1
    %249 = vsyncpa [#allocation5], 1

</llo_original>
